<compile_context>
chip_gen: v7x
topology: tpu7x:2x2x1
jax: 0.10.0
libtpu: 0.0.40
codegen_flags: <defaults>
</compile_context>

<pallas_src>
import jax
import jax.numpy as jnp
from jax.experimental import pallas as pl
from jax.experimental.pallas import tpu as pltpu


def _fair_token_kernel(para_ref, out_ref):
    # Single whole-array VMEM tile: materialize the parameter as the output.
    out_ref[...] = para_ref[...]


def fair_token_forward(para: jax.Array) -> jax.Array:
    """Pallas implementation of FairToken.forward(): returns `para`.

    Single grid-free pallas_call over a lane-dense 2D slab
    (num_basis * token_length, emb_dim) = (6, 768).
    """
    num_basis, token_length, emb_dim = para.shape
    para_2d = para.reshape(num_basis * token_length, emb_dim)

    out_2d = pl.pallas_call(
        _fair_token_kernel,
        out_shape=jax.ShapeDtypeStruct(para_2d.shape, para_2d.dtype),
        in_specs=[pl.BlockSpec(memory_space=pltpu.MemorySpace.VMEM)],
        out_specs=pl.BlockSpec(memory_space=pltpu.MemorySpace.VMEM),
        input_output_aliases={0: 0},
    )(para_2d)

    return out_2d.reshape(num_basis, token_length, emb_dim)


def init_fair_token_params(num_basis=2, token_length=3, emb_dim=768, dtype=jnp.float32):
    """Matches nn.Parameter(torch.zeros(num_basis, token_length, emb_dim))."""
    return jnp.zeros((num_basis, token_length, emb_dim), dtype=dtype)


if __name__ == "__main__":
    num_basis, token_length, emb_dim = 2, 3, 768

    # Deterministic parameter init, exactly as the PyTorch module: zeros.
    para = init_fair_token_params(num_basis, token_length, emb_dim)
    out = fair_token_forward(para)
    jax.block_until_ready(out)
    assert out.shape == (num_basis, token_length, emb_dim)
    assert out.dtype == para.dtype
    assert bool(jnp.all(out == para))

    # Sanity check that the kernel is a faithful identity on non-trivial
    # values (e.g. after "training" the token): random params via PRNGKey(0).
    key = jax.random.PRNGKey(0)
    para_rand = jax.random.normal(
        key, (num_basis, token_length, emb_dim), dtype=jnp.float32
    )
    out_rand = fair_token_forward(para_rand)
    jax.block_until_ready(out_rand)
    assert bool(jnp.all(out_rand == para_rand))

    print("KERNEL_OK")
</pallas_src>

<mosaic_0001>
module attributes {stable_mosaic.version = 11 : i64} {
  func.func @_fair_token_kernel(%arg0: memref<6x768xf32, #tpu.memory_space<vmem>>, %arg1: memref<6x768xf32, #tpu.memory_space<vmem>>) attributes {dimension_semantics = [], scalar_prefetch = 0 : i64, scratch_operands = 0 : i64, tpu.core_type = #tpu.core_type<tc>} {
    %c0 = arith.constant 0 : index
    %c0_0 = arith.constant 0 : index
    %0 = vector.load %arg0[%c0, %c0_0] : memref<6x768xf32, #tpu.memory_space<vmem>>, vector<6x768xf32>
    %c0_1 = arith.constant 0 : index
    %c0_2 = arith.constant 0 : index
    %1 = vector.load %arg1[%c0_1, %c0_2] : memref<6x768xf32, #tpu.memory_space<vmem>>, vector<6x768xf32>
    tpu.vector_store %arg1[%c0_1, %c0_2], %0 {strides = array<i32>} : memref<6x768xf32, #tpu.memory_space<vmem>>, vector<6x768xf32>,
    return
  }
}

</mosaic_0001>

<llo_original>
// kernel: tpu_custom_call.1
$region0: #{tpu_custom_call.1}
  #allocation0 [shape = 'u32[]', space=smem, size = 0x4, offset = 0x4, fixed_abs, tag = 'smem constant byte address 0x4 - core index']
  #allocation1 [shape = 'u32[144,128]{1,0:T(1,128)}', space=vmem, size = 0x12000, scoped, tag = 'internal scratch']
  %s0 = inlined_call_operand.hbm [shape: f32[6,768], index: 0, kind: input, shape index: {}, may-alias: {0,1}]
  %s1 = inlined_call_operand.hbm [shape: f32[6,768], index: 1, kind: output, shape index: {}, may-alias: {0,1}]
  %s2 = sld [smem:[#allocation0]]
  $region18: #{tpu_custom_call.1} parent=0
    _
  %s4 = ssub.s32 1, %s2
  %s5 = scalar_select 0, %s4, %s2
  $region1: #{tpu_custom_call.1} parent=0
    #allocation2 [shape = 'u8[24576]{0}', space=vmem, size = 0x6000, scoped, tag = 'input window, operand 0, single buffered']
    #allocation3 [shape = 's32[1]{0}', space=sflag, size = 0x4, scoped, tag = 'scoped memory for tpu_custom_call.1']
    #allocation4 [shape = 's32[1]{0}', space=sflag, size = 0x4, scoped, tag = 'scoped memory for tpu_custom_call.1']
    #allocation5 [shape = 'u8[24576]{0}', space=vmem, size = 0x6000, scoped, tag = 'output window, operand 0, single buffered']
    %6 = vsyncpa [#allocation3], 0
    %7 = vsyncpa [#allocation4], 0
    // Predicated region
    $region2: #{tpu_custom_call.1} parent=1 // pred_check
      _
    $region3: #{tpu_custom_call.1} parent=1 // pred_check_branch
      %9 = sbr.rel (0) target = $region5
    $region4: #{tpu_custom_call.1} parent=1 // pred_region
      %s11 = ssub.s32 768, 768
      %12 = vsyncadd [#allocation3], %s11
      %s14 = sshll.u32 [#allocation2], 4
      %s15 = int_to_ptr.vmem [resolvable:$true] %s14
      %17 = dma.hbm_to_vmem [thread:$0]  %s0, 768, %s15, [#allocation3]
    $region5: #{tpu_custom_call.1} parent=1 // pred_fallthru
      _
    // Predicated region
    $region6: #{tpu_custom_call.1} parent=1 // pred_check
      _
    $region7: #{tpu_custom_call.1} parent=1 // pred_check_branch
      %19 = sbr.rel (0) target = $region9
    $region8: #{tpu_custom_call.1} parent=1 // pred_region
      %20 = dma.done [#allocation3], 768
    $region9: #{tpu_custom_call.1} parent=1 // pred_fallthru
      _
    %v21 = vld [vmem:[#allocation2] sm:$0x3f]
    %v22 = vld [vmem:[#allocation2 + $0x8] sm:$0x3f]
    %v23 = vld [vmem:[#allocation2 + $0x10] sm:$0x3f]
    %v24 = vld [vmem:[#allocation2 + $0x18] sm:$0x3f]
    %v25 = vld [vmem:[#allocation2 + $0x20] sm:$0x3f]
    %v26 = vld [vmem:[#allocation2 + $0x28] sm:$0x3f]
    %27 = vst [vmem:[#allocation5] sm:$0x3f] %v21
    %28 = vst [vmem:[#allocation5 + $0x8] sm:$0x3f] %v22
    %29 = vst [vmem:[#allocation5 + $0x10] sm:$0x3f] %v23
    %30 = vst [vmem:[#allocation5 + $0x18] sm:$0x3f] %v24
    %31 = vst [vmem:[#allocation5 + $0x20] sm:$0x3f] %v25
    %32 = vst [vmem:[#allocation5 + $0x28] sm:$0x3f] %v26
    // Predicated region
    $region10: #{tpu_custom_call.1} parent=1 // pred_check
      _
    $region11: #{tpu_custom_call.1} parent=1 // pred_check_branch
      %34 = sbr.rel (0) target = $region13
    $region12: #{tpu_custom_call.1} parent=1 // pred_region
      %s36 = ssub.s32 768, 768
      %37 = vsyncadd [#allocation4], %s36
      %s39 = sshll.u32 [#allocation5], 4
      %s40 = int_to_ptr.vmem [resolvable:$true] %s39
      %42 = dma.vmem_to_hbm [thread:$0]  %s40, 768, %s1, [#allocation4]
    $region13: #{tpu_custom_call.1} parent=1 // pred_fallthru
      _
    // Predicated region
    $region14: #{tpu_custom_call.1} parent=1 // pred_check
      _
    $region15: #{tpu_custom_call.1} parent=1 // pred_check_branch
      %44 = sbr.rel (0) target = $region17
    $region16: #{tpu_custom_call.1} parent=1 // pred_region
      %45 = dma.done [#allocation4], 768
    $region17: #{tpu_custom_call.1} parent=1 // pred_fallthru
      _
    %46 = vsyncpa [#allocation3], 1
    %47 = vsyncpa [#allocation4], 1

</llo_original>
